<compile_context>
chip_gen: v7x
topology: tpu7x:2x2x1
jax: 0.10.0
libtpu: 0.0.40
codegen_flags: <defaults>
</compile_context>

<pallas_src>
import functools

import jax
import jax.numpy as jnp
from jax.experimental import pallas as pl
from jax.experimental.pallas import tpu as pltpu


def _round_up(x, m):
    return (x + m - 1) // m * m


# ---------------------------------------------------------------------------
# Pass 1: per-graph raw sums, accumulated into a resident [B, 4] output.
# ---------------------------------------------------------------------------
def _stats_kernel(batch_ref, s_ref, v_ref, gsum_ref, *, num_graphs, vdim):
    @pl.when(pl.program_id(0) == 0)
    def _init():
        gsum_ref[...] = jnp.zeros_like(gsum_ref)

    s = s_ref[...].astype(jnp.float32)                       # [T, S]
    v0 = v_ref[...][:, :vdim].astype(jnp.float32)            # [T, V] (component 0)
    batch = batch_ref[...]                                   # [T, 1] int32
    t = s.shape[0]

    # onehot[i, g] = 1 iff node i belongs to graph g; padded rows (id==B) -> 0.
    onehot = (batch == jax.lax.broadcasted_iota(jnp.int32, (t, num_graphs), 1)
              ).astype(jnp.float32)                          # [T, B]

    stats = jnp.concatenate(
        [jnp.ones((t, 1), jnp.float32),                      # counts
         jnp.mean(s, axis=-1, keepdims=True),                # E_j[s]
         jnp.mean(s * s, axis=-1, keepdims=True),            # E_j[s^2]
         jnp.sum(v0 * v0, axis=-1, keepdims=True)],          # |v[:,0,:]|^2
        axis=1)                                              # [T, 4]

    # Fused scatter-add of all four statistics as one MXU matmul (contract N).
    gsum_ref[...] += jax.lax.dot_general(
        onehot, stats, dimension_numbers=(((0,), (0,)), ((), ())),
        preferred_element_type=jnp.float32)                  # [B, 4]


# ---------------------------------------------------------------------------
# Pass 2: finalize tiny per-graph scales, gather via MXU, apply, fused store.
# ---------------------------------------------------------------------------
def _apply_kernel(batch_ref, s_ref, v_ref, w_ref, b_ref, gsum_ref, out_ref,
                  *, num_graphs, eps):
    s = s_ref[...].astype(jnp.float32)                       # [T, S]
    vflat = v_ref[...].astype(jnp.float32)                   # [T, 3V]
    batch = batch_ref[...]                                   # [T, 1]
    gs = gsum_ref[...]                                       # [B, 4] f32 (resident)
    t = s.shape[0]

    # Finalize per-graph stats (B-sized: negligible per-tile recompute).
    # Exact reciprocals (divides) kept: approx=True would break 1e-5 tolerance.
    inv_c = 1.0 / jnp.maximum(gs[:, 0:1], 1.0)               # [B, 1]
    smean_g = gs[:, 1:2] * inv_c                             # E[s] per graph
    var_g = jnp.maximum(gs[:, 2:3] * inv_c - smean_g * smean_g, eps)
    prec_g = 1.0 / var_g
    vinv_g = 1.0 / jnp.maximum(gs[:, 3:4] * inv_c, eps)
    gparams = jnp.concatenate([smean_g, prec_g, vinv_g], axis=1)   # [B, 3]

    # Gather per-node params with a single MXU matmul.
    onehot = (batch == jax.lax.broadcasted_iota(jnp.int32, (t, num_graphs), 1)
              ).astype(jnp.float32)                          # [T, B]
    node = jnp.dot(onehot, gparams, preferred_element_type=jnp.float32)  # [T, 3]

    s_c = s - node[:, 0:1]
    sout = s_c * node[:, 1:2] * w_ref[...] + b_ref[...]      # [T, S]
    vout = vflat * node[:, 2:3]                              # [T, 3V] multiply, not divide
    out_ref[...] = jnp.concatenate([sout, vout], axis=1).astype(out_ref.dtype)


def layer_norm_pallas(s, v, batch, weight, bias, *, num_graphs, eps=1e-6):
    """num_graphs must be a static Python int (jit-safe: no device sync/retrace)."""
    n, sdim = s.shape
    _, three, vdim = v.shape
    assert three == 3
    assert s.dtype == v.dtype
    fdim = sdim + 3 * vdim
    out_dtype = s.dtype

    v_flat = v.reshape(n, 3 * vdim)                          # lane-dense [N, 3V]
    batch2d = batch.astype(jnp.int32).reshape(n, 1)
    w2d = weight.astype(jnp.float32).reshape(1, sdim)
    b2d = bias.astype(jnp.float32).reshape(1, sdim)

    # Row tile: biggest multiple of 8 whose double-buffered in+out working set
    # stays well under every chip's scoped-VMEM default (re-derived per shapes,
    # not hard-coded for one generation).
    bytes_per_row = 4 * (1 + sdim + 3 * vdim + fdim)
    budget = 10 * 1024 * 1024
    tile_n = max(8, min(2048, (budget // (2 * bytes_per_row)) // 8 * 8))
    tile_n = min(tile_n, _round_up(n, 8))
    n_pad = _round_up(n, tile_n)

    if n_pad != n:
        pad = n_pad - n
        s_p = jnp.pad(s, ((0, pad), (0, 0)))
        v_p = jnp.pad(v_flat, ((0, pad), (0, 0)))
        # Padded rows get an out-of-range graph id -> all-zero one-hot row.
        batch_p = jnp.pad(batch2d, ((0, pad), (0, 0)), constant_values=num_graphs)
    else:
        s_p, v_p, batch_p = s, v_flat, batch2d

    grid = (n_pad // tile_n,)
    row = lambda i: (i, 0)
    const = lambda i: (0, 0)
    vmem_limit = int(min(max(6 * tile_n * bytes_per_row, 16 * 1024 * 1024),
                         48 * 1024 * 1024))

    # ---- pass 1: per-graph raw sums (reduction over row tiles) ----
    stats_cost = pl.CostEstimate(
        flops=int(n_pad * (3 * sdim + 2 * vdim + 9 * num_graphs)),
        transcendentals=0,
        bytes_accessed=int(4 * n_pad * (1 + sdim + 3 * vdim) + 16 * num_graphs))
    gsums = pl.pallas_call(
        functools.partial(_stats_kernel, num_graphs=num_graphs, vdim=vdim),
        out_shape=jax.ShapeDtypeStruct((num_graphs, 4), jnp.float32),
        grid=grid,
        in_specs=[pl.BlockSpec((tile_n, 1), row),
                  pl.BlockSpec((tile_n, sdim), row),
                  pl.BlockSpec((tile_n, 3 * vdim), row)],
        out_specs=pl.BlockSpec((num_graphs, 4), const),
        compiler_params=pltpu.CompilerParams(
            dimension_semantics=("arbitrary",),
            vmem_limit_bytes=vmem_limit),
        cost_estimate=stats_cost,
    )(batch_p, s_p, v_p)

    # ---- pass 2: bandwidth-heavy apply (independent row tiles) ----
    apply_cost = pl.CostEstimate(
        flops=int(n_pad * (4 * sdim + 2 * 3 * vdim + 7 * num_graphs)),
        transcendentals=0,
        bytes_accessed=int(4 * n_pad * (1 + sdim + 3 * vdim)
                           + n_pad * fdim * jnp.dtype(out_dtype).itemsize))
    out_slab = pl.pallas_call(
        functools.partial(_apply_kernel, num_graphs=num_graphs, eps=eps),
        out_shape=jax.ShapeDtypeStruct((n_pad, fdim), out_dtype),
        grid=grid,
        in_specs=[pl.BlockSpec((tile_n, 1), row),
                  pl.BlockSpec((tile_n, sdim), row),
                  pl.BlockSpec((tile_n, 3 * vdim), row),
                  pl.BlockSpec((1, sdim), const),
                  pl.BlockSpec((1, sdim), const),
                  pl.BlockSpec((num_graphs, 4), const)],
        out_specs=pl.BlockSpec((tile_n, fdim), row),
        compiler_params=pltpu.CompilerParams(
            dimension_semantics=("parallel",),
            vmem_limit_bytes=vmem_limit),
        cost_estimate=apply_cost,
    )(batch_p, s_p, v_p, w2d, b2d, gsums)

    sout = out_slab[:n, :sdim]
    vout = out_slab[:n, sdim:].reshape(n, 3, vdim)
    return sout, vout


def layer_norm_reference(s, v, batch, weight, bias, num_graphs, eps=1e-6):
    """Pure-JAX reference (mirrors the PyTorch non-CPU branch)."""
    counts = jnp.maximum(
        jax.ops.segment_sum(jnp.ones_like(batch, dtype=jnp.float32), batch,
                            num_segments=num_graphs), 1.0)
    smean_node = s.mean(-1)
    smean = (jax.ops.segment_sum(smean_node, batch, num_segments=num_graphs)
             / counts)[batch][:, None]
    s_c = s - smean
    var_node = (s_c * s_c).mean(-1)
    var_g = jnp.maximum(
        jax.ops.segment_sum(var_node, batch, num_segments=num_graphs) / counts, eps)
    prec = (1.0 / var_g)[batch][:, None]
    sout = s_c * prec * weight + bias
    vnorm_node = (v * v).sum(-1)[:, 0]
    vnorm_g = jnp.maximum(
        jax.ops.segment_sum(vnorm_node, batch, num_segments=num_graphs) / counts, eps)
    vout = v / vnorm_g[batch][:, None, None]
    return sout, vout


if __name__ == "__main__":
    N, SDIM, VDIM = 8, 32, 16
    NUM_GRAPHS = 2
    key = jax.random.PRNGKey(0)
    ks, kv = jax.random.split(key)
    s = jax.random.normal(ks, (N, SDIM), dtype=jnp.float32)
    v = jax.random.normal(kv, (N, 3, VDIM), dtype=jnp.float32)
    batch = jnp.array([0, 0, 0, 1, 1, 1, 1, 1], dtype=jnp.int32)

    # Deterministic parameter init (matches LayerNorm.reset_parameters()).
    weight = jnp.ones((SDIM,), dtype=jnp.float32)
    bias = jnp.zeros((SDIM,), dtype=jnp.float32)

    ln = jax.jit(layer_norm_pallas, static_argnames=("num_graphs", "eps"))
    sout, vout = ln(s, v, batch, weight, bias, num_graphs=NUM_GRAPHS, eps=1e-6)
    jax.block_until_ready((sout, vout))

    sref, vref = layer_norm_reference(s, v, batch, weight, bias, NUM_GRAPHS)
    assert sout.shape == s.shape and vout.shape == v.shape
    assert jnp.allclose(sout, sref, atol=1e-5, rtol=1e-5), "scalar branch mismatch"
    assert jnp.allclose(vout, vref, atol=1e-5, rtol=1e-5), "vector branch mismatch"

    print("KERNEL_OK")
</pallas_src>

<mosaic_0001>
module attributes {stable_mosaic.version = 11 : i64} {
  func.func @_stats_kernel(%arg0: i32, %arg1: memref<8x1xi32, #tpu.memory_space<vmem>>, %arg2: memref<8x32xf32, #tpu.memory_space<vmem>>, %arg3: memref<8x48xf32, #tpu.memory_space<vmem>>, %arg4: memref<2x4xf32, #tpu.memory_space<vmem>>) attributes {dimension_semantics = [#tpu.dimension_semantics<arbitrary>], iteration_bounds = array<i64: 1>, scalar_prefetch = 0 : i64, scratch_operands = 0 : i64, tpu.core_type = #tpu.core_type<tc>, window_params = [{transform_indices = @transform_0, window_bounds = array<i64: 8, 1>}, {transform_indices = @transform_1, window_bounds = array<i64: 8, 32>}, {transform_indices = @transform_2, window_bounds = array<i64: 8, 48>}, {pipeline_mode = #tpu.pipeline_mode<synchronous>, transform_indices = @transform_3, window_bounds = array<i64: 2, 4>}]} {
    %c0_i32 = arith.constant 0 : i32
    %0 = arith.cmpi eq, %arg0, %c0_i32 : i32
    %1 = arith.extui %0 : i1 to i32
    %c0_i32_0 = arith.constant 0 : i32
    %2 = arith.cmpi ne, %1, %c0_i32_0 : i32
    scf.if %2 {
      %cst_16 = arith.constant 0.000000e+00 : f32
      %30 = vector.broadcast %cst_16 : f32 to vector<2x4xf32>
      %c0_17 = arith.constant 0 : index
      %c0_18 = arith.constant 0 : index
      %31 = vector.load %arg4[%c0_17, %c0_18] : memref<2x4xf32, #tpu.memory_space<vmem>>, vector<2x4xf32>
      tpu.vector_store %arg4[%c0_17, %c0_18], %30 {strides = array<i32>} : memref<2x4xf32, #tpu.memory_space<vmem>>, vector<2x4xf32>,
    } else {
    }
    %c0 = arith.constant 0 : index
    %c0_1 = arith.constant 0 : index
    %3 = vector.load %arg2[%c0, %c0_1] : memref<8x32xf32, #tpu.memory_space<vmem>>, vector<8x32xf32>
    %c0_2 = arith.constant 0 : index
    %c0_3 = arith.constant 0 : index
    %4 = vector.load %arg3[%c0_2, %c0_3] : memref<8x48xf32, #tpu.memory_space<vmem>>, vector<8x48xf32>
    %5 = vector.extract_strided_slice %4 {offsets = [0, 0], sizes = [8, 16], strides = [1, 1]} : vector<8x48xf32> to vector<8x16xf32>
    %c0_4 = arith.constant 0 : index
    %c0_5 = arith.constant 0 : index
    %6 = vector.load %arg1[%c0_4, %c0_5] : memref<8x1xi32, #tpu.memory_space<vmem>>, vector<8x1xi32>
    %7 = tpu.iota {dimensions = array<i32: 1>} : vector<8x2xi32>
    %8 = vector.broadcast %6 : vector<8x1xi32> to vector<8x2xi32>
    %9 = arith.cmpi eq, %8, %7 : vector<8x2xi32>
    %10 = arith.extui %9 : vector<8x2xi1> to vector<8x2xi32>
    %11 = arith.sitofp %10 : vector<8x2xi32> to vector<8x2xf32>
    %cst = arith.constant 1.000000e+00 : f32
    %12 = vector.broadcast %cst : f32 to vector<8x1xf32>
    %cst_6 = arith.constant dense<0.000000e+00> : vector<8xf32>
    %13 = vector.multi_reduction <add>, %3, %cst_6 [1] : vector<8x32xf32> to vector<8xf32>
    %14 = vector.shape_cast %13 : vector<8xf32> to vector<8x1xf32>
    %cst_7 = arith.constant 3.200000e+01 : f32
    %15 = vector.broadcast %cst_7 : f32 to vector<8x1xf32>
    %16 = arith.divf %14, %15 : vector<8x1xf32>
    %17 = arith.mulf %3, %3 : vector<8x32xf32>
    %cst_8 = arith.constant dense<0.000000e+00> : vector<8xf32>
    %18 = vector.multi_reduction <add>, %17, %cst_8 [1] : vector<8x32xf32> to vector<8xf32>
    %19 = vector.shape_cast %18 : vector<8xf32> to vector<8x1xf32>
    %cst_9 = arith.constant 3.200000e+01 : f32
    %20 = vector.broadcast %cst_9 : f32 to vector<8x1xf32>
    %21 = arith.divf %19, %20 : vector<8x1xf32>
    %22 = arith.mulf %5, %5 : vector<8x16xf32>
    %cst_10 = arith.constant dense<0.000000e+00> : vector<8xf32>
    %23 = vector.multi_reduction <add>, %22, %cst_10 [1] : vector<8x16xf32> to vector<8xf32>
    %24 = vector.shape_cast %23 : vector<8xf32> to vector<8x1xf32>
    %25 = tpu.concatenate %12, %16, %21, %24 in 1 : vector<8x1xf32>, vector<8x1xf32>, vector<8x1xf32>, vector<8x1xf32> -> vector<8x4xf32>
    %c0_11 = arith.constant 0 : index
    %c0_12 = arith.constant 0 : index
    %26 = vector.load %arg4[%c0_11, %c0_12] : memref<2x4xf32, #tpu.memory_space<vmem>>, vector<2x4xf32>
    %cst_13 = arith.constant dense<0.000000e+00> : vector<2x4xf32>
    %27 = tpu.matmul %11, %25, %cst_13 {dimension_numbers = #tpu.dot_dimension_numbers<[0], [0], [1], [1], [0, 1, 1, 1], [], []>} : vector<8x2xf32>, vector<8x4xf32>, vector<2x4xf32> -> vector<2x4xf32>
    %28 = arith.addf %26, %27 : vector<2x4xf32>
    %c0_14 = arith.constant 0 : index
    %c0_15 = arith.constant 0 : index
    %29 = vector.load %arg4[%c0_14, %c0_15] : memref<2x4xf32, #tpu.memory_space<vmem>>, vector<2x4xf32>
    tpu.vector_store %arg4[%c0_14, %c0_15], %28 {strides = array<i32>} : memref<2x4xf32, #tpu.memory_space<vmem>>, vector<2x4xf32>,
    return
  }
  func.func @transform_0(%arg0: i32) -> (i32, i32) {
    %c0_i32 = arith.constant 0 : i32
    %c0_i32_0 = arith.constant 0 : i32
    return %arg0, %c0_i32 : i32, i32
  }
  func.func @transform_1(%arg0: i32) -> (i32, i32) {
    %c0_i32 = arith.constant 0 : i32
    %c0_i32_0 = arith.constant 0 : i32
    return %arg0, %c0_i32 : i32, i32
  }
  func.func @transform_2(%arg0: i32) -> (i32, i32) {
    %c0_i32 = arith.constant 0 : i32
    %c0_i32_0 = arith.constant 0 : i32
    return %arg0, %c0_i32 : i32, i32
  }
  func.func @transform_3(%arg0: i32) -> (i32, i32) {
    %c0_i32 = arith.constant 0 : i32
    %c0_i32_0 = arith.constant 0 : i32
    %c0_i32_1 = arith.constant 0 : i32
    return %c0_i32, %c0_i32_0 : i32, i32
  }
}

module attributes {stable_mosaic.version = 11 : i64} {
  func.func @_apply_kernel(%arg0: i32, %arg1: memref<8x1xi32, #tpu.memory_space<vmem>>, %arg2: memref<8x32xf32, #tpu.memory_space<vmem>>, %arg3: memref<8x48xf32, #tpu.memory_space<vmem>>, %arg4: memref<1x32xf32, #tpu.memory_space<vmem>>, %arg5: memref<1x32xf32, #tpu.memory_space<vmem>>, %arg6: memref<2x4xf32, #tpu.memory_space<vmem>>, %arg7: memref<8x80xf32, #tpu.memory_space<vmem>>) attributes {dimension_semantics = [#tpu.dimension_semantics<parallel>], iteration_bounds = array<i64: 1>, scalar_prefetch = 0 : i64, scratch_operands = 0 : i64, tpu.core_type = #tpu.core_type<tc>, window_params = [{transform_indices = @transform_0, window_bounds = array<i64: 8, 1>}, {transform_indices = @transform_1, window_bounds = array<i64: 8, 32>}, {transform_indices = @transform_2, window_bounds = array<i64: 8, 48>}, {pipeline_mode = #tpu.pipeline_mode<synchronous>, transform_indices = @transform_3, window_bounds = array<i64: 1, 32>}, {pipeline_mode = #tpu.pipeline_mode<synchronous>, transform_indices = @transform_4, window_bounds = array<i64: 1, 32>}, {pipeline_mode = #tpu.pipeline_mode<synchronous>, transform_indices = @transform_5, window_bounds = array<i64: 2, 4>}, {transform_indices = @transform_6, window_bounds = array<i64: 8, 80>}]} {
    %c0 = arith.constant 0 : index
    %c0_0 = arith.constant 0 : index
    %0 = vector.load %arg2[%c0, %c0_0] : memref<8x32xf32, #tpu.memory_space<vmem>>, vector<8x32xf32>
    %c0_1 = arith.constant 0 : index
    %c0_2 = arith.constant 0 : index
    %1 = vector.load %arg3[%c0_1, %c0_2] : memref<8x48xf32, #tpu.memory_space<vmem>>, vector<8x48xf32>
    %c0_3 = arith.constant 0 : index
    %c0_4 = arith.constant 0 : index
    %2 = vector.load %arg1[%c0_3, %c0_4] : memref<8x1xi32, #tpu.memory_space<vmem>>, vector<8x1xi32>
    %c0_5 = arith.constant 0 : index
    %c0_6 = arith.constant 0 : index
    %3 = vector.load %arg6[%c0_5, %c0_6] : memref<2x4xf32, #tpu.memory_space<vmem>>, vector<2x4xf32>
    %4 = vector.extract_strided_slice %3 {offsets = [0, 0], sizes = [2, 1], strides = [1, 1]} : vector<2x4xf32> to vector<2x1xf32>
    %cst = arith.constant 1.000000e+00 : f32
    %5 = vector.broadcast %cst : f32 to vector<2x1xf32>
    %6 = arith.maximumf %4, %5 : vector<2x1xf32>
    %cst_7 = arith.constant 1.000000e+00 : f32
    %7 = vector.broadcast %cst_7 : f32 to vector<2x1xf32>
    %8 = arith.divf %7, %6 : vector<2x1xf32>
    %9 = vector.extract_strided_slice %3 {offsets = [0, 1], sizes = [2, 1], strides = [1, 1]} : vector<2x4xf32> to vector<2x1xf32>
    %10 = arith.mulf %9, %8 : vector<2x1xf32>
    %11 = vector.extract_strided_slice %3 {offsets = [0, 2], sizes = [2, 1], strides = [1, 1]} : vector<2x4xf32> to vector<2x1xf32>
    %12 = arith.mulf %11, %8 : vector<2x1xf32>
    %13 = arith.mulf %10, %10 : vector<2x1xf32>
    %14 = arith.subf %12, %13 : vector<2x1xf32>
    %cst_8 = arith.constant 9.99999997E-7 : f32
    %15 = vector.broadcast %cst_8 : f32 to vector<2x1xf32>
    %16 = arith.maximumf %14, %15 : vector<2x1xf32>
    %cst_9 = arith.constant 1.000000e+00 : f32
    %17 = vector.broadcast %cst_9 : f32 to vector<2x1xf32>
    %18 = arith.divf %17, %16 : vector<2x1xf32>
    %19 = vector.extract_strided_slice %3 {offsets = [0, 3], sizes = [2, 1], strides = [1, 1]} : vector<2x4xf32> to vector<2x1xf32>
    %20 = arith.mulf %19, %8 : vector<2x1xf32>
    %cst_10 = arith.constant 9.99999997E-7 : f32
    %21 = vector.broadcast %cst_10 : f32 to vector<2x1xf32>
    %22 = arith.maximumf %20, %21 : vector<2x1xf32>
    %cst_11 = arith.constant 1.000000e+00 : f32
    %23 = vector.broadcast %cst_11 : f32 to vector<2x1xf32>
    %24 = arith.divf %23, %22 : vector<2x1xf32>
    %25 = tpu.concatenate %10, %18, %24 in 1 : vector<2x1xf32>, vector<2x1xf32>, vector<2x1xf32> -> vector<2x3xf32>
    %26 = tpu.iota {dimensions = array<i32: 1>} : vector<8x2xi32>
    %27 = vector.broadcast %2 : vector<8x1xi32> to vector<8x2xi32>
    %28 = arith.cmpi eq, %27, %26 : vector<8x2xi32>
    %29 = arith.extui %28 : vector<8x2xi1> to vector<8x2xi32>
    %30 = arith.sitofp %29 : vector<8x2xi32> to vector<8x2xf32>
    %cst_12 = arith.constant dense<0.000000e+00> : vector<8x3xf32>
    %31 = tpu.matmul %30, %25, %cst_12 {dimension_numbers = #tpu.dot_dimension_numbers<[1], [0], [0], [1], [0, 0, 1, 1], [], []>} : vector<8x2xf32>, vector<2x3xf32>, vector<8x3xf32> -> vector<8x3xf32>
    %32 = vector.extract_strided_slice %31 {offsets = [0, 0], sizes = [8, 1], strides = [1, 1]} : vector<8x3xf32> to vector<8x1xf32>
    %33 = vector.broadcast %32 : vector<8x1xf32> to vector<8x32xf32>
    %34 = arith.subf %0, %33 : vector<8x32xf32>
    %35 = vector.extract_strided_slice %31 {offsets = [0, 1], sizes = [8, 1], strides = [1, 1]} : vector<8x3xf32> to vector<8x1xf32>
    %36 = vector.broadcast %35 : vector<8x1xf32> to vector<8x32xf32>
    %37 = arith.mulf %34, %36 : vector<8x32xf32>
    %c0_13 = arith.constant 0 : index
    %c0_14 = arith.constant 0 : index
    %38 = vector.load %arg4[%c0_13, %c0_14] : memref<1x32xf32, #tpu.memory_space<vmem>>, vector<1x32xf32>
    %39 = vector.broadcast %38 : vector<1x32xf32> to vector<8x32xf32>
    %40 = arith.mulf %37, %39 : vector<8x32xf32>
    %c0_15 = arith.constant 0 : index
    %c0_16 = arith.constant 0 : index
    %41 = vector.load %arg5[%c0_15, %c0_16] : memref<1x32xf32, #tpu.memory_space<vmem>>, vector<1x32xf32>
    %42 = vector.broadcast %41 : vector<1x32xf32> to vector<8x32xf32>
    %43 = arith.addf %40, %42 : vector<8x32xf32>
    %44 = vector.extract_strided_slice %31 {offsets = [0, 2], sizes = [8, 1], strides = [1, 1]} : vector<8x3xf32> to vector<8x1xf32>
    %45 = vector.broadcast %44 : vector<8x1xf32> to vector<8x48xf32>
    %46 = arith.mulf %1, %45 : vector<8x48xf32>
    %47 = tpu.concatenate %43, %46 in 1 : vector<8x32xf32>, vector<8x48xf32> -> vector<8x80xf32>
    %c0_17 = arith.constant 0 : index
    %c0_18 = arith.constant 0 : index
    %48 = vector.load %arg7[%c0_17, %c0_18] : memref<8x80xf32, #tpu.memory_space<vmem>>, vector<8x80xf32>
    tpu.vector_store %arg7[%c0_17, %c0_18], %47 {strides = array<i32>} : memref<8x80xf32, #tpu.memory_space<vmem>>, vector<8x80xf32>,
    return
  }
  func.func @transform_0(%arg0: i32) -> (i32, i32) {
    %c0_i32 = arith.constant 0 : i32
    %c0_i32_0 = arith.constant 0 : i32
    return %arg0, %c0_i32 : i32, i32
  }
  func.func @transform_1(%arg0: i32) -> (i32, i32) {
    %c0_i32 = arith.constant 0 : i32
    %c0_i32_0 = arith.constant 0 : i32
    return %arg0, %c0_i32 : i32, i32
  }
  func.func @transform_2(%arg0: i32) -> (i32, i32) {
    %c0_i32 = arith.constant 0 : i32
    %c0_i32_0 = arith.constant 0 : i32
    return %arg0, %c0_i32 : i32, i32
  }
  func.func @transform_3(%arg0: i32) -> (i32, i32) {
    %c0_i32 = arith.constant 0 : i32
    %c0_i32_0 = arith.constant 0 : i32
    %c0_i32_1 = arith.constant 0 : i32
    return %c0_i32, %c0_i32_0 : i32, i32
  }
  func.func @transform_4(%arg0: i32) -> (i32, i32) {
    %c0_i32 = arith.constant 0 : i32
    %c0_i32_0 = arith.constant 0 : i32
    %c0_i32_1 = arith.constant 0 : i32
    return %c0_i32, %c0_i32_0 : i32, i32
  }
  func.func @transform_5(%arg0: i32) -> (i32, i32) {
    %c0_i32 = arith.constant 0 : i32
    %c0_i32_0 = arith.constant 0 : i32
    %c0_i32_1 = arith.constant 0 : i32
    return %c0_i32, %c0_i32_0 : i32, i32
  }
  func.func @transform_6(%arg0: i32) -> (i32, i32) {
    %c0_i32 = arith.constant 0 : i32
    %c0_i32_0 = arith.constant 0 : i32
    return %arg0, %c0_i32 : i32, i32
  }
}

</mosaic_0001>

<llo_original>
// kernel: layer_norm_pallas.2
$region0: #{layer_norm_pallas.2}
  #allocation0 [shape = 'u32[]', space=smem, size = 0x4, offset = 0x4, fixed_abs, tag = 'smem constant byte address 0x4 - core index']
  #allocation1 [shape = 'u32[144,128]{1,0:T(1,128)}', space=vmem, size = 0x12000, scoped, tag = 'internal scratch']
  %s0 = inlined_call_operand.vmem [shape: s32[8,1], index: 0, kind: input, shape index: {}]
  %s1 = inlined_call_operand.vmem [shape: f32[8,32], index: 1, kind: input, shape index: {}]
  %s2 = inlined_call_operand.vmem [shape: f32[8,48], index: 2, kind: input, shape index: {}]
  %s3 = inlined_call_operand.vmem [shape: f32[2,4], index: 3, kind: output, shape index: {}]
  %s4 = sld [smem:[#allocation0]]
  $region26: #{layer_norm_pallas.2} parent=0
    _
  %s6 = ssub.s32 1, %s4
  %s7 = scalar_select 0, %s6, %s4
  // Predicated region
  $region2: #{layer_norm_pallas.2} parent=0 // pred_check
    _
  $region3: #{layer_norm_pallas.2} parent=0 // pred_check_branch
    %9 = sbr.rel (0) target = $region5
  $region4: #{layer_norm_pallas.2} parent=0 // pred_region
    _
  $region5: #{layer_norm_pallas.2} parent=0 // pred_fallthru
    _
  // Predicated region
  $region6: #{layer_norm_pallas.2} parent=0 // pred_check
    _
  $region7: #{layer_norm_pallas.2} parent=0 // pred_check_branch
    %11 = sbr.rel (0) target = $region9
  $region8: #{layer_norm_pallas.2} parent=0 // pred_region
    _
  $region9: #{layer_norm_pallas.2} parent=0 // pred_fallthru
    _
  // Predicated region
  $region10: #{layer_norm_pallas.2} parent=0 // pred_check
    _
  $region11: #{layer_norm_pallas.2} parent=0 // pred_check_branch
    %13 = sbr.rel (0) target = $region13
  $region12: #{layer_norm_pallas.2} parent=0 // pred_region
    _
  $region13: #{layer_norm_pallas.2} parent=0 // pred_fallthru
    _
  %p14 = scmp.eq.s32.totalorder 0, 0
  // Predicated region
  $region14: #{layer_norm_pallas.2} parent=0 // pred_check
    %p15 = pneg %p14
  $region15: #{layer_norm_pallas.2} parent=0 // pred_check_branch
    %17 = sbr.rel (%p15) target = $region17
  $region16: #{layer_norm_pallas.2} parent=0 // pred_region
    %vm18 = vcmask 25600
    %19 = vst.msk [vmem:[%s3] sm:$0x3] %vm18, 0.0
  $region17: #{layer_norm_pallas.2} parent=0 // pred_fallthru
    _
  %v20 = vld [vmem:[%s1] sm:$0xff]
  %v21 = vld [vmem:[%s2] sm:$0xff]
  %v22 = vld [vmem:[%s0] sm:$0xff]
  %v23 = vlaneseq
  %v24 = vand.u32 %v23, 127
  %25 = vset.pattern.permute.xlu0 0
  %26 = vperm.xlu0 %25, %v22
  %v27 = vpop.permute.xlu0 %26
  %vm28 = vcmp.eq.s32.totalorder %v27, %v24
  %v29 = vsel %vm28, 1, 0
  %v30 = vcvt.s32.f32 %v29
  %vm31 = vcmask 261120
  %v32 = vsel %vm31, %v20, 0.0
  %33 = vadd.xlane.f32.xlu0 %v32
  %v34 = vpop.xlane.xlu0 %33
  %v35 = vrcp.pop 32.0
  %v36 = vmul.f32 %v34, %v35
  %v37 = vmul.f32 %v20, %v20
  %v38 = vsel %vm31, %v37, 0.0
  %39 = vadd.xlane.f32.xlu0 %v38
  %v40 = vpop.xlane.xlu0 %39
  %v41 = vmul.f32 %v40, %v35
  %v42 = vmul.f32 %v21, %v21
  %vm43 = vcmask 130048
  %v44 = vsel %vm43, %v42, 0.0
  %45 = vadd.xlane.f32.xlu0 %v44
  %v46 = vpop.xlane.xlu0 %45
  %vm47 = vcmask 7168
  %v48 = vsel %vm47, 1.0, %v36
  %vm49 = vcmask 15360
  %v50 = vsel %vm49, %v48, %v41
  %vm51 = vcmask 23552
  %v52 = vsel %vm51, %v50, %v46
  %v53 = vld [vmem:[%s3] sm:$0x3]
  %54 = vxpose.xlu0.b32.start [1/16] %v30, 128
  %55 = vxpose.xlu0.b32.cont [2/16] 0.0, 128
  %56 = vxpose.xlu0.b32.cont [3/16] 0.0, 128
  %57 = vxpose.xlu0.b32.cont [4/16] 0.0, 128
  %58 = vxpose.xlu0.b32.cont [5/16] 0.0, 128
  %59 = vxpose.xlu0.b32.cont [6/16] 0.0, 128
  %60 = vxpose.xlu0.b32.cont [7/16] 0.0, 128
  %61 = vxpose.xlu0.b32.cont [8/16] 0.0, 128
  %62 = vxpose.xlu0.b32.cont [9/16] 0.0, 128
  %63 = vxpose.xlu0.b32.cont [10/16] 0.0, 128
  %64 = vxpose.xlu0.b32.cont [11/16] 0.0, 128
  %65 = vxpose.xlu0.b32.cont [12/16] 0.0, 128
  %66 = vxpose.xlu0.b32.cont [13/16] 0.0, 128
  %67 = vxpose.xlu0.b32.cont [14/16] 0.0, 128
  %68 = vxpose.xlu0.b32.cont [15/16] 0.0, 128
  %69 = vxpose.xlu0.b32.end [16/16] 0.0, 128
  %v70 = vpop.trf.xlu0
  %v71 = vpop.trf.xlu0
  %v72 = vpop.trf.xlu0
  %v73 = vpop.trf.xlu0
  %v74 = vpop.trf.xlu0
  %v75 = vpop.trf.xlu0
  %v76 = vpop.trf.xlu0
  %v77 = vpop.trf.xlu0
  %v78 = vpop.trf.xlu0
  %v79 = vpop.trf.xlu0
  %v80 = vpop.trf.xlu0
  %v81 = vpop.trf.xlu0
  %v82 = vpop.trf.xlu0
  %v83 = vpop.trf.xlu0
  %v84 = vpop.trf.xlu0
  %v85 = vpop.trf.xlu0
  %vm86 = vcmask 64512
  %v88 = vsel %vm86, %v70, 0
  %90 = vmatprep.subr.mxu0 0.0
  %91 = vmatpush1.msra.mxu0 %v52
  %92 = vmatprep.subr.mxu0 0.0
  %93 = vmatpush1.msra.mxu0 0.0
  %94 = vmatprep.subr.mxu0 0.0
  %95 = vmatpush1.msra.mxu0 0.0
  %96 = vmatprep.subr.mxu0 0.0
  %97 = vmatpush1.msra.mxu0 0.0
  %98 = vmatprep.subr.mxu0 0.0
  %99 = vmatpush1.msra.mxu0 0.0
  %100 = vmatprep.subr.mxu0 0.0
  %101 = vmatpush1.msra.mxu0 0.0
  %102 = vmatprep.subr.mxu0 0.0
  %103 = vmatpush1.msra.mxu0 0.0
  %104 = vmatprep.subr.mxu0 0.0
  %105 = vmatpush1.msra.mxu0 0.0
  %106 = vmatprep.subr.mxu0 0.0
  %107 = vmatpush1.msra.mxu0 0.0
  %108 = vmatprep.subr.mxu0 0.0
  %109 = vmatpush1.msra.mxu0 0.0
  %110 = vmatprep.subr.mxu0 0.0
  %111 = vmatpush1.msra.mxu0 0.0
  %112 = vmatprep.subr.mxu0 0.0
  %113 = vmatpush1.msra.mxu0 0.0
  %114 = vmatprep.subr.mxu0 0.0
  %115 = vmatpush1.msra.mxu0 0.0
  %116 = vmatprep.subr.mxu0 0.0
  %117 = vmatpush1.msra.mxu0 0.0
  %118 = vmatprep.subr.mxu0 0.0
  %119 = vmatpush1.msra.mxu0 0.0
  %120 = vmatprep.subr.mxu0 0.0
  %121 = vmatpush1.msra.mxu0 0.0
  %122 = vmatprep.subr.mxu0 0.0
  %123 = vmatpush1.msra.mxu0 0.0
  %124 = vmatprep.subr.mxu0 0.0
  %125 = vmatpush1.msra.mxu0 0.0
  %126 = vmatprep.subr.mxu0 0.0
  %127 = vmatpush1.msra.mxu0 0.0
  %128 = vmatprep.subr.mxu0 0.0
  %129 = vmatpush1.msra.mxu0 0.0
  %130 = vmatprep.subr.mxu0 0.0
  %131 = vmatpush1.msra.mxu0 0.0
  %132 = vmatprep.subr.mxu0 0.0
  %133 = vmatpush1.msra.mxu0 0.0
  %134 = vmatprep.subr.mxu0 0.0
  %135 = vmatpush1.msra.mxu0 0.0
  %136 = vmatprep.subr.mxu0 0.0
  %137 = vmatpush1.msra.mxu0 0.0
  %138 = vmatprep.subr.mxu0 0.0
  %139 = vmatpush1.msra.mxu0 0.0
  %140 = vmatprep.subr.mxu0 0.0
  %141 = vmatpush1.msra.mxu0 0.0
  %142 = vmatprep.subr.mxu0 0.0
  %143 = vmatpush1.msra.mxu0 0.0
  %144 = vmatprep.subr.mxu0 0.0
  %145 = vmatpush1.msra.mxu0 0.0
  %146 = vmatprep.subr.mxu0 0.0
  %147 = vmatpush1.msra.mxu0 0.0
  %148 = vmatprep.subr.mxu0 0.0
  %149 = vmatpush1.msra.mxu0 0.0
  %150 = vmatprep.subr.mxu0 0.0
  %151 = vmatpush1.msra.mxu0 0.0
  %152 = vmatprep.subr.mxu0 0.0
  %153 = vmatpush1.msra.mxu0 0.0
  %154 = vmatprep.mubr.f32.mxu0 0.0
  %155 = vmatmul.mubr.f32.gmra.mrb[0].mxu0 %v88
  %v156 = vpop.f32.mrb[0].mxu0
  %v157 = vadd.f32 0.0, %v156
  %v158 = vpop.f32.mrb[0].mxu0
  %159 = vdwg.mxu0
  %v160 = vadd.f32 %v53, %v157
  %vm161 = vcmask 25600
  %162 = vst.msk [vmem:[%s3] sm:$0x3] %vm161, %v160
  // Predicated region
  $region18: #{layer_norm_pallas.2} parent=0 // pred_check
    _
  $region19: #{layer_norm_pallas.2} parent=0 // pred_check_branch
    %164 = sbr.rel (0) target = $region21
  $region20: #{layer_norm_pallas.2} parent=0 // pred_region
    _
  $region21: #{layer_norm_pallas.2} parent=0 // pred_fallthru
    _
  // Predicated region
  $region22: #{layer_norm_pallas.2} parent=0 // pred_check
    _
  $region23: #{layer_norm_pallas.2} parent=0 // pred_check_branch
    %166 = sbr.rel (0) target = $region25
  $region24: #{layer_norm_pallas.2} parent=0 // pred_region
    _
  $region25: #{layer_norm_pallas.2} parent=0 // pred_fallthru
    _

// kernel: layer_norm_pallas.3
$region0: #{layer_norm_pallas.3}
  #allocation0 [shape = 'u32[]', space=smem, size = 0x4, offset = 0x4, fixed_abs, tag = 'smem constant byte address 0x4 - core index']
  #allocation1 [shape = 'u32[144,128]{1,0:T(1,128)}', space=vmem, size = 0x12000, scoped, tag = 'internal scratch']
  %s0 = inlined_call_operand.vmem [shape: s32[8,1], index: 0, kind: input, shape index: {}]
  %s1 = inlined_call_operand.vmem [shape: f32[8,32], index: 1, kind: input, shape index: {}]
  %s2 = inlined_call_operand.vmem [shape: f32[8,48], index: 2, kind: input, shape index: {}]
  %s3 = inlined_call_operand.vmem [shape: f32[1,32], index: 3, kind: input, shape index: {}]
  %s4 = inlined_call_operand.vmem [shape: f32[1,32], index: 4, kind: input, shape index: {}]
  %s5 = inlined_call_operand.vmem [shape: f32[2,4], index: 5, kind: input, shape index: {}]
  %s6 = inlined_call_operand.vmem [shape: f32[8,80], index: 6, kind: output, shape index: {}]
  %s7 = sld [smem:[#allocation0]]
  $region34: #{layer_norm_pallas.3} parent=0
    _
  %s9 = ssub.s32 1, %s7
  %s10 = scalar_select 0, %s9, %s7
  // Predicated region
  $region2: #{layer_norm_pallas.3} parent=0 // pred_check
    _
  $region3: #{layer_norm_pallas.3} parent=0 // pred_check_branch
    %12 = sbr.rel (0) target = $region5
  $region4: #{layer_norm_pallas.3} parent=0 // pred_region
    _
  $region5: #{layer_norm_pallas.3} parent=0 // pred_fallthru
    _
  // Predicated region
  $region6: #{layer_norm_pallas.3} parent=0 // pred_check
    _
  $region7: #{layer_norm_pallas.3} parent=0 // pred_check_branch
    %14 = sbr.rel (0) target = $region9
  $region8: #{layer_norm_pallas.3} parent=0 // pred_region
    _
  $region9: #{layer_norm_pallas.3} parent=0 // pred_fallthru
    _
  // Predicated region
  $region10: #{layer_norm_pallas.3} parent=0 // pred_check
    _
  $region11: #{layer_norm_pallas.3} parent=0 // pred_check_branch
    %16 = sbr.rel (0) target = $region13
  $region12: #{layer_norm_pallas.3} parent=0 // pred_region
    _
  $region13: #{layer_norm_pallas.3} parent=0 // pred_fallthru
    _
  // Predicated region
  $region14: #{layer_norm_pallas.3} parent=0 // pred_check
    _
  $region15: #{layer_norm_pallas.3} parent=0 // pred_check_branch
    %18 = sbr.rel (0) target = $region17
  $region16: #{layer_norm_pallas.3} parent=0 // pred_region
    _
  $region17: #{layer_norm_pallas.3} parent=0 // pred_fallthru
    _
  // Predicated region
  $region18: #{layer_norm_pallas.3} parent=0 // pred_check
    _
  $region19: #{layer_norm_pallas.3} parent=0 // pred_check_branch
    %20 = sbr.rel (0) target = $region21
  $region20: #{layer_norm_pallas.3} parent=0 // pred_region
    _
  $region21: #{layer_norm_pallas.3} parent=0 // pred_fallthru
    _
  // Predicated region
  $region22: #{layer_norm_pallas.3} parent=0 // pred_check
    _
  $region23: #{layer_norm_pallas.3} parent=0 // pred_check_branch
    %22 = sbr.rel (0) target = $region25
  $region24: #{layer_norm_pallas.3} parent=0 // pred_region
    _
  $region25: #{layer_norm_pallas.3} parent=0 // pred_fallthru
    _
  %v23 = vld [vmem:[%s1] sm:$0xff]
  %v24 = vld [vmem:[%s2] sm:$0xff]
  %v25 = vld [vmem:[%s0] sm:$0xff]
  %v26 = vld [vmem:[%s5] sm:$0x3]
  %v27 = vmax.f32 %v26, 1.0
  %v28 = vrcp.pop %v27
  %v29 = vmul.f32 1.0, %v28
  %31 = vrot.lane.b32.xlu0 %v29, 1
  %v32 = vpop.permute.xlu0 %31
  %v34 = vmul.f32 %v26, %v32
  %35 = vrot.lane.b32.xlu0 %v29, 2
  %v36 = vpop.permute.xlu0 %35
  %v38 = vmul.f32 %v26, %v36
  %v39 = vmul.f32 %v34, %v34
  %41 = vrot.lane.b32.xlu0 %v39, 1
  %v42 = vpop.permute.xlu0 %41
  %v44 = vsub.f32 %v38, %v42
  %v45 = vmax.f32 %v44, 1e-06
  %v46 = vrcp.pop %v45
  %v47 = vmul.f32 1.0, %v46
  %48 = vrot.lane.b32.xlu0 %v29, 3
  %v49 = vpop.permute.xlu0 %48
  %v51 = vmul.f32 %v26, %v49
  %v52 = vmax.f32 %v51, 1e-06
  %v53 = vrcp.pop %v52
  %v54 = vmul.f32 1.0, %v53
  %56 = vrot.lane.b32.xlu0 %v34, 127
  %v57 = vpop.permute.xlu0 %56
  %60 = vrot.lane.b32.xlu0 %v47, 127
  %v61 = vpop.permute.xlu0 %60
  %64 = vrot.lane.b32.xlu0 %v54, 127
  %v65 = vpop.permute.xlu0 %64
  %vm67 = vcmask 7168
  %v68 = vsel %vm67, %v57, %v61
  %vm69 = vcmask 15360
  %v70 = vsel %vm69, %v68, %v65
  %v71 = vlaneseq
  %v72 = vand.u32 %v71, 127
  %73 = vset.pattern.permute.xlu0 0
  %74 = vperm.xlu0 %73, %v25
  %v75 = vpop.permute.xlu0 %74
  %vm76 = vcmp.eq.s32.totalorder %v75, %v72
  %v77 = vsel %vm76, 1, 0
  %v78 = vcvt.s32.f32 %v77
  %v80 = vsel %vm69, %v78, 0
  %vm82 = vcmask 1041408
  %v84 = vsel %vm82, %v70, 0
  %86 = vmatprep.subr.mxu0 0.0
  %87 = vmatpush1.msra.mxu0 %v84
  %88 = vmatprep.subr.mxu0 0.0
  %89 = vmatpush1.msra.mxu0 0.0
  %90 = vmatprep.subr.mxu0 0.0
  %91 = vmatpush1.msra.mxu0 0.0
  %92 = vmatprep.subr.mxu0 0.0
  %93 = vmatpush1.msra.mxu0 0.0
  %94 = vmatprep.subr.mxu0 0.0
  %95 = vmatpush1.msra.mxu0 0.0
  %96 = vmatprep.subr.mxu0 0.0
  %97 = vmatpush1.msra.mxu0 0.0
  %98 = vmatprep.subr.mxu0 0.0
  %99 = vmatpush1.msra.mxu0 0.0
  %100 = vmatprep.subr.mxu0 0.0
  %101 = vmatpush1.msra.mxu0 0.0
  %102 = vmatprep.subr.mxu0 0.0
  %103 = vmatpush1.msra.mxu0 0.0
  %104 = vmatprep.subr.mxu0 0.0
  %105 = vmatpush1.msra.mxu0 0.0
  %106 = vmatprep.subr.mxu0 0.0
  %107 = vmatpush1.msra.mxu0 0.0
  %108 = vmatprep.subr.mxu0 0.0
  %109 = vmatpush1.msra.mxu0 0.0
  %110 = vmatprep.subr.mxu0 0.0
  %111 = vmatpush1.msra.mxu0 0.0
  %112 = vmatprep.subr.mxu0 0.0
  %113 = vmatpush1.msra.mxu0 0.0
  %114 = vmatprep.subr.mxu0 0.0
  %115 = vmatpush1.msra.mxu0 0.0
  %116 = vmatprep.subr.mxu0 0.0
  %117 = vmatpush1.msra.mxu0 0.0
  %118 = vmatprep.subr.mxu0 0.0
  %119 = vmatpush1.msra.mxu0 0.0
  %120 = vmatprep.subr.mxu0 0.0
  %121 = vmatpush1.msra.mxu0 0.0
  %122 = vmatprep.subr.mxu0 0.0
  %123 = vmatpush1.msra.mxu0 0.0
  %124 = vmatprep.subr.mxu0 0.0
  %125 = vmatpush1.msra.mxu0 0.0
  %126 = vmatprep.subr.mxu0 0.0
  %127 = vmatpush1.msra.mxu0 0.0
  %128 = vmatprep.subr.mxu0 0.0
  %129 = vmatpush1.msra.mxu0 0.0
  %130 = vmatprep.subr.mxu0 0.0
  %131 = vmatpush1.msra.mxu0 0.0
  %132 = vmatprep.subr.mxu0 0.0
  %133 = vmatpush1.msra.mxu0 0.0
  %134 = vmatprep.subr.mxu0 0.0
  %135 = vmatpush1.msra.mxu0 0.0
  %136 = vmatprep.subr.mxu0 0.0
  %137 = vmatpush1.msra.mxu0 0.0
  %138 = vmatprep.subr.mxu0 0.0
  %139 = vmatpush1.msra.mxu0 0.0
  %140 = vmatprep.subr.mxu0 0.0
  %141 = vmatpush1.msra.mxu0 0.0
  %142 = vmatprep.subr.mxu0 0.0
  %143 = vmatpush1.msra.mxu0 0.0
  %144 = vmatprep.subr.mxu0 0.0
  %145 = vmatpush1.msra.mxu0 0.0
  %146 = vmatprep.subr.mxu0 0.0
  %147 = vmatpush1.msra.mxu0 0.0
  %148 = vmatprep.subr.mxu0 0.0
  %149 = vmatpush1.msra.mxu0 0.0
  %150 = vmatprep.mubr.f32.mxu0 0.0
  %151 = vmatmul.mubr.f32.gmra.mrb[0].mxu0 %v80
  %v152 = vpop.f32.mrb[0].mxu0
  %v153 = vadd.f32 0.0, %v152
  %v154 = vpop.f32.mrb[0].mxu0
  %155 = vdwg.mxu0
  %157 = vset.pattern.permute.xlu0 0
  %158 = vperm.xlu0 %157, %v153
  %v159 = vpop.permute.xlu0 %158
  %v161 = vsub.f32 %v23, %v159
  %162 = vset.pattern.permute.xlu0 1
  %163 = vperm.xlu0 %162, %v153
  %v164 = vpop.permute.xlu0 %163
  %v166 = vmul.f32 %v161, %v164
  %v167 = vld [vmem:[%s3] sm:$0x1]
  %v169 = vlaneseq
  %v170 = vshrl.u32 %v169, 7
  %v171 = vsub.s32 0, %v170
  %v172 = vrot.slane %v167, %v171
  %v174 = vmul.f32 %v166, %v172
  %v175 = vld [vmem:[%s4] sm:$0x1]
  %v177 = vlaneseq
  %v178 = vshrl.u32 %v177, 7
  %v179 = vsub.s32 0, %v178
  %v180 = vrot.slane %v175, %v179
  %v182 = vadd.f32 %v174, %v180
  %183 = vset.pattern.permute.xlu0 2
  %184 = vperm.xlu0 %183, %v153
  %v185 = vpop.permute.xlu0 %184
  %v187 = vmul.f32 %v24, %v185
  %189 = vrot.lane.b32.xlu0 %v187, 32
  %v190 = vpop.permute.xlu0 %189
  %vm192 = vcmask 261120
  %v193 = vsel %vm192, %v182, %v190
  %vm194 = vcmask 654336
  %195 = vst.msk [vmem:[%s6] sm:$0xff] %vm194, %v193
  // Predicated region
  $region26: #{layer_norm_pallas.3} parent=0 // pred_check
    _
  $region27: #{layer_norm_pallas.3} parent=0 // pred_check_branch
    %197 = sbr.rel (0) target = $region29
  $region28: #{layer_norm_pallas.3} parent=0 // pred_region
    _
  $region29: #{layer_norm_pallas.3} parent=0 // pred_fallthru
    _
  // Predicated region
  $region30: #{layer_norm_pallas.3} parent=0 // pred_check
    _
  $region31: #{layer_norm_pallas.3} parent=0 // pred_check_branch
    %199 = sbr.rel (0) target = $region33
  $region32: #{layer_norm_pallas.3} parent=0 // pred_region
    _
  $region33: #{layer_norm_pallas.3} parent=0 // pred_fallthru
    _

</llo_original>
